<compile_context>
chip_gen: v5e
topology: v5e:2x2
jax: 0.10.0
libtpu: 0.0.40
codegen_flags: <defaults>
</compile_context>

<pallas_src>
import functools

import numpy as np
import jax
import jax.numpy as jnp
from jax.experimental import pallas as pl
from jax.experimental.pallas import tpu as pltpu


def _round_up(x, m):
    return (x + m - 1) // m * m


def _cdiv(a, b):
    return (a + b - 1) // b


def _dw_kernel(x_ref, w_ref, b_ref, o_ref, *, Kh, Kw, W_p, L_out, chunk):
    """One (batch*row-tile, channel-group) block of a stride-1 depthwise conv.

    x_ref: (1, SUB, L_in)   flattened padded rows (lanes), channels on sublanes
    w_ref: (Kh*Kw, SUB, 1)  per-channel taps
    b_ref: (SUB, 1)         bias
    o_ref: (1, SUB, L_out)  L_out = H_blk * W_p (junk W-pad cols sliced by caller)
    """
    x = x_ref[0]                                   # (SUB, L_in), input dtype
    bias = b_ref[...].astype(jnp.float32)          # (SUB, 1)
    taps = [w_ref[t] for t in range(Kh * Kw)]      # hoisted (SUB, 1) tap loads
    # Register-blocked accumulation: all Kh*Kw taps are applied to one lane
    # chunk while its f32 accumulator stays resident in vregs.
    for c0 in range(0, L_out, chunk):
        n = min(chunk, L_out - c0)
        acc = jnp.zeros((x.shape[0], n), jnp.float32)
        for ki in range(Kh):
            for kj in range(Kw):
                d = c0 + ki * W_p + kj             # tap (ki,kj) == flat shift
                prod = x[:, d:d + n] * taps[ki * Kw + kj]   # input-dtype mul
                acc = acc + prod.astype(jnp.float32)        # f32 accumulate
        o_ref[0, :, c0:c0 + n] = (acc + bias).astype(o_ref.dtype)


def _dw_stride1(x, weight, bias, padding):
    """Stride-1 depthwise conv, NCHW in / NCHW out.  weight: (C, 1, Kh, Kw)."""
    N, C, H, W = x.shape
    Kh, Kw = weight.shape[-2], weight.shape[-1]
    P = padding
    H_out = H + 2 * P - Kh + 1
    W_out = W + 2 * P - Kw + 1
    W_p = W + 2 * P
    itemsize = x.dtype.itemsize

    # --- channel grouping: channels map to the sublane axis -----------------
    if C <= 64:
        SUB = C                       # full-extent sublane block: no channel pad
    else:
        SUB = 64
        for s in (64, 32, 16, 8):
            if C % s == 0:
                SUB = s
                break
    C_tot = _round_up(C, SUB)
    CG = C_tot // SUB

    # --- spatial tiling over output rows (halo = Kh-1 rows) -----------------
    MIN_STEPS = 8                     # enough grid steps to pipeline / feed 2 TCs
    L_TARGET = 4096                   # lanes per tile (bounds per-block VMEM)
    T = max(_cdiv(MIN_STEPS, N * CG), _cdiv(H_out * W_p, L_TARGET), 1)
    T = min(T, max(1, H_out // max(4, Kh)))
    H_blk = _cdiv(H_out, T)
    T = _cdiv(H_out, H_blk)
    R_blk = H_blk + Kh - 1                      # rows needed per tile (with halo)
    R_g = R_blk + _cdiv(Kw - 1, W_p)            # + slack rows so last tap slice fits
    H_tot = (T - 1) * H_blk + R_g
    L_in = R_g * W_p
    L_out = H_blk * W_p
    NT = N * T

    # --- layout glue: NCHW-native; one pad, row gather only if T > 1 --------
    x_pad = jnp.pad(x, ((0, 0), (0, C_tot - C),
                        (P, P + (H_tot - (H + 2 * P))), (P, P)))
    if T > 1:
        row_idx = (np.arange(T)[:, None] * H_blk +
                   np.arange(R_g)[None, :]).reshape(-1)
        xg = jnp.take(x_pad, jnp.asarray(row_idx), axis=2)   # (N, C_tot, T*R_g, W_p)
        xg = xg.reshape(N, C_tot, T, L_in)
        x_t = jnp.transpose(xg, (0, 2, 1, 3)).reshape(NT, C_tot, L_in)
    else:
        x_t = x_pad.reshape(N, C_tot, L_in)

    w_t = jnp.transpose(weight[:, 0, :, :], (1, 2, 0)).reshape(Kh * Kw, C)
    w_t = jnp.pad(w_t, ((0, 0), (0, C_tot - C))).reshape(Kh * Kw, C_tot, 1)
    b_t = jnp.pad(bias, (0, C_tot - C)).reshape(C_tot, 1)

    # --- block sizing / compiler hints ---------------------------------------
    chunk = max(128, min(2048, (64 * 1024 // (SUB * 4)) // 128 * 128))
    blk_bytes = (SUB * (L_in + L_out) * itemsize
                 + (Kh * Kw + 1) * SUB * itemsize)
    need = 2 * blk_bytes + 6 * SUB * max(L_in, L_out) * 4
    vmem_limit = int(min(48 * 2 ** 20, max(32 * 2 ** 20, 2 * need)))
    cost = pl.CostEstimate(
        flops=int(2 * Kh * Kw * NT * C_tot * L_out),
        transcendentals=0,
        bytes_accessed=int((x_t.size + NT * C_tot * L_out + w_t.size + b_t.size)
                           * itemsize))

    kernel = functools.partial(_dw_kernel, Kh=Kh, Kw=Kw, W_p=W_p,
                               L_out=L_out, chunk=chunk)
    out_t = pl.pallas_call(
        kernel,
        out_shape=jax.ShapeDtypeStruct((NT, C_tot, L_out), x.dtype),
        grid_spec=pltpu.PrefetchScalarGridSpec(
            num_scalar_prefetch=0,
            grid=(NT, CG),
            in_specs=[
                pl.BlockSpec((1, SUB, L_in), lambda i, c: (i, c, 0)),
                pl.BlockSpec((Kh * Kw, SUB, 1), lambda i, c: (0, c, 0)),
                pl.BlockSpec((SUB, 1), lambda i, c: (c, 0)),
            ],
            out_specs=pl.BlockSpec((1, SUB, L_out), lambda i, c: (i, c, 0)),
        ),
        compiler_params=pltpu.CompilerParams(
            dimension_semantics=("parallel", "parallel"),
            vmem_limit_bytes=vmem_limit),
        cost_estimate=cost,
    )(x_t, w_t, b_t)

    if T > 1:
        out = out_t.reshape(N, T, C_tot, H_blk, W_p)
        out = jnp.transpose(out, (0, 2, 1, 3, 4)).reshape(N, C_tot, T * H_blk, W_p)
    else:
        out = out_t.reshape(N, C_tot, H_blk, W_p)
    # Single fused slice drops junk channels / junk bottom rows / W padding.
    return out[:, :C, :H_out, :W_out]


def depthwise_conv2d(x, weight, bias=None, *, stride=1, padding=0):
    """Depthwise conv (groups == C).  x: (N, C, H, W); weight: (C, 1, Kh, Kw)."""
    N, C, H, W = x.shape
    Kh, Kw = weight.shape[-2], weight.shape[-1]
    if bias is None:
        bias = jnp.zeros((C,), x.dtype)
    if stride == 1:
        return _dw_stride1(x, weight, bias, padding)

    # stride > 1: polyphase decomposition.  Each of the S^2 phase planes sees a
    # stride-1 depthwise conv with contiguous taps, so the optimized stride-1
    # Pallas path is reused verbatim; phase outputs are summed in XLA.
    S = stride
    H_out = (H + 2 * padding - Kh) // S + 1
    W_out = (W + 2 * padding - Kw) // S + 1
    x_p = jnp.pad(x, ((0, 0), (0, 0), (padding, padding), (padding, padding)))
    zero_b = jnp.zeros_like(bias)
    out = None
    for s1 in range(S):
        for s2 in range(S):
            w_ph = weight[:, :, s1::S, s2::S]
            if w_ph.shape[-2] == 0 or w_ph.shape[-1] == 0:
                continue
            x_ph = x_p[:, :, s1::S, s2::S]
            b_ph = bias if (s1 == 0 and s2 == 0) else zero_b
            o_ph = _dw_stride1(x_ph, w_ph, b_ph, 0)[:, :, :H_out, :W_out]
            out = o_ph if out is None else out + o_ph
    return out


def _reference(x, weight, bias, *, stride=1, padding=0):
    C = x.shape[1]
    out = jax.lax.conv_general_dilated(
        x, weight,
        window_strides=(stride, stride),
        padding=[(padding, padding), (padding, padding)],
        dimension_numbers=("NCHW", "OIHW", "NCHW"),
        feature_group_count=C)
    return out + bias.reshape(1, C, 1, 1)


if __name__ == "__main__":
    key = jax.random.PRNGKey(0)

    def check(N, C, H, W, K, stride, padding):
        kx, kw, kb = jax.random.split(
            jax.random.fold_in(key, 1000 * K + 10 * stride + C), 3)
        x = jax.random.normal(kx, (N, C, H, W), dtype=jnp.float32)
        # PyTorch Conv2d default init bound: sqrt(1 / fan_in), fan_in = K*K.
        bound = 1.0 / (K * K) ** 0.5
        weight = jax.random.uniform(kw, (C, 1, K, K), jnp.float32, -bound, bound)
        bias = jax.random.uniform(kb, (C,), jnp.float32, -bound, bound)

        out = depthwise_conv2d(x, weight, bias, stride=stride, padding=padding)
        out = jax.block_until_ready(out)
        ref = _reference(x, weight, bias, stride=stride, padding=padding)
        assert out.shape == ref.shape, (out.shape, ref.shape)
        err = float(jnp.max(jnp.abs(out - ref)))
        assert jnp.allclose(out, ref, atol=1e-5, rtol=1e-5), err

    check(2, 4, 16, 16, 3, 1, 1)     # primary SEINet-style config (8 grid steps)
    check(2, 4, 16, 16, 5, 1, 2)     # larger kernel / padding
    check(2, 256, 16, 16, 3, 1, 1)   # multi channel-group path (CG > 1)
    check(2, 4, 16, 16, 3, 2, 1)     # stride-2 polyphase path
    print("KERNEL_OK")
</pallas_src>

<mosaic_0001>
module attributes {stable_mosaic.version = 11 : i64} {
  func.func @_dw_kernel(%arg0: i32, %arg1: i32, %arg2: memref<1x4x126xf32, #tpu.memory_space<vmem>>, %arg3: memref<9x4x1xf32, #tpu.memory_space<vmem>>, %arg4: memref<4x1xf32, #tpu.memory_space<vmem>>, %arg5: memref<1x4x72xf32, #tpu.memory_space<vmem>>) attributes {dimension_semantics = [#tpu.dimension_semantics<parallel>, #tpu.dimension_semantics<parallel>], iteration_bounds = array<i64: 8, 1>, scalar_prefetch = 0 : i64, scratch_operands = 0 : i64, tpu.core_type = #tpu.core_type<tc>, window_params = [{transform_indices = @transform_0, window_bounds = array<i64: 1, 4, 126>}, {transform_indices = @transform_1, window_bounds = array<i64: 9, 4, 1>}, {transform_indices = @transform_2, window_bounds = array<i64: 4, 1>}, {transform_indices = @transform_3, window_bounds = array<i64: 1, 4, 72>}]} {
    %c0 = arith.constant 0 : index
    %c0_0 = arith.constant 0 : index
    %c0_1 = arith.constant 0 : index
    %0 = vector.load %arg2[%c0, %c0_0, %c0_1] : memref<1x4x126xf32, #tpu.memory_space<vmem>>, vector<1x4x126xf32>
    %1 = vector.shape_cast %0 : vector<1x4x126xf32> to vector<4x126xf32>
    %c0_2 = arith.constant 0 : index
    %c0_3 = arith.constant 0 : index
    %2 = vector.load %arg4[%c0_2, %c0_3] : memref<4x1xf32, #tpu.memory_space<vmem>>, vector<4x1xf32>
    %c0_4 = arith.constant 0 : index
    %c0_5 = arith.constant 0 : index
    %c0_6 = arith.constant 0 : index
    %3 = vector.load %arg3[%c0_4, %c0_5, %c0_6] : memref<9x4x1xf32, #tpu.memory_space<vmem>>, vector<1x4x1xf32>
    %4 = vector.shape_cast %3 : vector<1x4x1xf32> to vector<4x1xf32>
    %c1 = arith.constant 1 : index
    %c0_7 = arith.constant 0 : index
    %c0_8 = arith.constant 0 : index
    %5 = vector.load %arg3[%c1, %c0_7, %c0_8] : memref<9x4x1xf32, #tpu.memory_space<vmem>>, vector<1x4x1xf32>
    %6 = vector.shape_cast %5 : vector<1x4x1xf32> to vector<4x1xf32>
    %c2 = arith.constant 2 : index
    %c0_9 = arith.constant 0 : index
    %c0_10 = arith.constant 0 : index
    %7 = vector.load %arg3[%c2, %c0_9, %c0_10] : memref<9x4x1xf32, #tpu.memory_space<vmem>>, vector<1x4x1xf32>
    %8 = vector.shape_cast %7 : vector<1x4x1xf32> to vector<4x1xf32>
    %c3 = arith.constant 3 : index
    %c0_11 = arith.constant 0 : index
    %c0_12 = arith.constant 0 : index
    %9 = vector.load %arg3[%c3, %c0_11, %c0_12] : memref<9x4x1xf32, #tpu.memory_space<vmem>>, vector<1x4x1xf32>
    %10 = vector.shape_cast %9 : vector<1x4x1xf32> to vector<4x1xf32>
    %c4 = arith.constant 4 : index
    %c0_13 = arith.constant 0 : index
    %c0_14 = arith.constant 0 : index
    %11 = vector.load %arg3[%c4, %c0_13, %c0_14] : memref<9x4x1xf32, #tpu.memory_space<vmem>>, vector<1x4x1xf32>
    %12 = vector.shape_cast %11 : vector<1x4x1xf32> to vector<4x1xf32>
    %c5 = arith.constant 5 : index
    %c0_15 = arith.constant 0 : index
    %c0_16 = arith.constant 0 : index
    %13 = vector.load %arg3[%c5, %c0_15, %c0_16] : memref<9x4x1xf32, #tpu.memory_space<vmem>>, vector<1x4x1xf32>
    %14 = vector.shape_cast %13 : vector<1x4x1xf32> to vector<4x1xf32>
    %c6 = arith.constant 6 : index
    %c0_17 = arith.constant 0 : index
    %c0_18 = arith.constant 0 : index
    %15 = vector.load %arg3[%c6, %c0_17, %c0_18] : memref<9x4x1xf32, #tpu.memory_space<vmem>>, vector<1x4x1xf32>
    %16 = vector.shape_cast %15 : vector<1x4x1xf32> to vector<4x1xf32>
    %c7 = arith.constant 7 : index
    %c0_19 = arith.constant 0 : index
    %c0_20 = arith.constant 0 : index
    %17 = vector.load %arg3[%c7, %c0_19, %c0_20] : memref<9x4x1xf32, #tpu.memory_space<vmem>>, vector<1x4x1xf32>
    %18 = vector.shape_cast %17 : vector<1x4x1xf32> to vector<4x1xf32>
    %c8 = arith.constant 8 : index
    %c0_21 = arith.constant 0 : index
    %c0_22 = arith.constant 0 : index
    %19 = vector.load %arg3[%c8, %c0_21, %c0_22] : memref<9x4x1xf32, #tpu.memory_space<vmem>>, vector<1x4x1xf32>
    %20 = vector.shape_cast %19 : vector<1x4x1xf32> to vector<4x1xf32>
    %cst = arith.constant 0.000000e+00 : f32
    %21 = vector.broadcast %cst : f32 to vector<4x72xf32>
    %22 = vector.extract_strided_slice %1 {offsets = [0, 0], sizes = [4, 72], strides = [1, 1]} : vector<4x126xf32> to vector<4x72xf32>
    %23 = vector.broadcast %4 : vector<4x1xf32> to vector<4x72xf32>
    %24 = arith.mulf %22, %23 : vector<4x72xf32>
    %25 = arith.addf %21, %24 : vector<4x72xf32>
    %26 = vector.extract_strided_slice %1 {offsets = [0, 1], sizes = [4, 72], strides = [1, 1]} : vector<4x126xf32> to vector<4x72xf32>
    %27 = vector.broadcast %6 : vector<4x1xf32> to vector<4x72xf32>
    %28 = arith.mulf %26, %27 : vector<4x72xf32>
    %29 = arith.addf %25, %28 : vector<4x72xf32>
    %30 = vector.extract_strided_slice %1 {offsets = [0, 2], sizes = [4, 72], strides = [1, 1]} : vector<4x126xf32> to vector<4x72xf32>
    %31 = vector.broadcast %8 : vector<4x1xf32> to vector<4x72xf32>
    %32 = arith.mulf %30, %31 : vector<4x72xf32>
    %33 = arith.addf %29, %32 : vector<4x72xf32>
    %34 = vector.extract_strided_slice %1 {offsets = [0, 18], sizes = [4, 72], strides = [1, 1]} : vector<4x126xf32> to vector<4x72xf32>
    %35 = vector.broadcast %10 : vector<4x1xf32> to vector<4x72xf32>
    %36 = arith.mulf %34, %35 : vector<4x72xf32>
    %37 = arith.addf %33, %36 : vector<4x72xf32>
    %38 = vector.extract_strided_slice %1 {offsets = [0, 19], sizes = [4, 72], strides = [1, 1]} : vector<4x126xf32> to vector<4x72xf32>
    %39 = vector.broadcast %12 : vector<4x1xf32> to vector<4x72xf32>
    %40 = arith.mulf %38, %39 : vector<4x72xf32>
    %41 = arith.addf %37, %40 : vector<4x72xf32>
    %42 = vector.extract_strided_slice %1 {offsets = [0, 20], sizes = [4, 72], strides = [1, 1]} : vector<4x126xf32> to vector<4x72xf32>
    %43 = vector.broadcast %14 : vector<4x1xf32> to vector<4x72xf32>
    %44 = arith.mulf %42, %43 : vector<4x72xf32>
    %45 = arith.addf %41, %44 : vector<4x72xf32>
    %46 = vector.extract_strided_slice %1 {offsets = [0, 36], sizes = [4, 72], strides = [1, 1]} : vector<4x126xf32> to vector<4x72xf32>
    %47 = vector.broadcast %16 : vector<4x1xf32> to vector<4x72xf32>
    %48 = arith.mulf %46, %47 : vector<4x72xf32>
    %49 = arith.addf %45, %48 : vector<4x72xf32>
    %50 = vector.extract_strided_slice %1 {offsets = [0, 37], sizes = [4, 72], strides = [1, 1]} : vector<4x126xf32> to vector<4x72xf32>
    %51 = vector.broadcast %18 : vector<4x1xf32> to vector<4x72xf32>
    %52 = arith.mulf %50, %51 : vector<4x72xf32>
    %53 = arith.addf %49, %52 : vector<4x72xf32>
    %54 = vector.extract_strided_slice %1 {offsets = [0, 38], sizes = [4, 72], strides = [1, 1]} : vector<4x126xf32> to vector<4x72xf32>
    %55 = vector.broadcast %20 : vector<4x1xf32> to vector<4x72xf32>
    %56 = arith.mulf %54, %55 : vector<4x72xf32>
    %57 = arith.addf %53, %56 : vector<4x72xf32>
    %58 = vector.broadcast %2 : vector<4x1xf32> to vector<4x72xf32>
    %59 = arith.addf %57, %58 : vector<4x72xf32>
    %c0_23 = arith.constant 0 : index
    %c0_24 = arith.constant 0 : index
    %c0_25 = arith.constant 0 : index
    %60 = vector.load %arg5[%c0_23, %c0_24, %c0_25] : memref<1x4x72xf32, #tpu.memory_space<vmem>>, vector<1x4x72xf32>
    %61 = vector.shape_cast %60 : vector<1x4x72xf32> to vector<4x72xf32>
    %62 = vector.shape_cast %59 : vector<4x72xf32> to vector<1x4x72xf32>
    tpu.vector_store %arg5[%c0_23, %c0_24, %c0_25], %62 {strides = array<i32>} : memref<1x4x72xf32, #tpu.memory_space<vmem>>, vector<1x4x72xf32>,
    return
  }
  func.func @transform_0(%arg0: i32, %arg1: i32) -> (i32, i32, i32) {
    %c0_i32 = arith.constant 0 : i32
    %c0_i32_0 = arith.constant 0 : i32
    return %arg0, %arg1, %c0_i32 : i32, i32, i32
  }
  func.func @transform_1(%arg0: i32, %arg1: i32) -> (i32, i32, i32) {
    %c0_i32 = arith.constant 0 : i32
    %c0_i32_0 = arith.constant 0 : i32
    %c0_i32_1 = arith.constant 0 : i32
    return %c0_i32, %arg1, %c0_i32_0 : i32, i32, i32
  }
  func.func @transform_2(%arg0: i32, %arg1: i32) -> (i32, i32) {
    %c0_i32 = arith.constant 0 : i32
    %c0_i32_0 = arith.constant 0 : i32
    return %arg1, %c0_i32 : i32, i32
  }
  func.func @transform_3(%arg0: i32, %arg1: i32) -> (i32, i32, i32) {
    %c0_i32 = arith.constant 0 : i32
    %c0_i32_0 = arith.constant 0 : i32
    return %arg0, %arg1, %c0_i32 : i32, i32, i32
  }
}

</mosaic_0001>

<llo_original>
// kernel: tpu_custom_call.1
$region0: #{tpu_custom_call.1}
  #allocation0 [shape = 'u32[]', space=smem, size = 0x4, offset = 0x4, fixed_abs, tag = 'smem constant byte address 0x4 - core index']
  #allocation1 [shape = 'u32[72,128]{1,0:T(1,128)}', space=vmem, size = 0x9000, scoped, tag = 'internal scratch']
  %s0 = inlined_call_operand.vmem [shape: f32[8,4,126], index: 0, kind: input, shape index: {}]
  %s1 = inlined_call_operand.vmem [shape: f32[9,4,1], index: 1, kind: input, shape index: {}]
  %s2 = inlined_call_operand.vmem [shape: f32[4,1], index: 2, kind: input, shape index: {}]
  %s3 = inlined_call_operand.hbm [shape: f32[8,4,72], index: 3, kind: output, shape index: {}]
  %s4 = sld [smem:[#allocation0]]
  $region45: #{tpu_custom_call.1} parent=0
    _
  %s6 = ssub.s32 1, %s4
  %s7 = scalar_select 0, %s6, %s4
  $region1: #{tpu_custom_call.1} parent=0
    #allocation2 [shape = 'u8[4096]{0}', space=vmem, size = 0x1000, scoped, tag = 'output window, operand 0']
    #allocation3 [shape = 's32[2]{0}', space=sflag, size = 0x8, scoped, tag = 'scoped memory for tpu_custom_call.1']
    %8 = vsyncpa [#allocation3], 0
    %s9 = scalar_lea.sflag [#allocation3], 1
    %10 = vsyncpa %s9, 0
    loop: start=0, step=1, limit=10
    $region2: #{tpu_custom_call.1} parent=1 // loop_pre_header
      _
    $region3: #{tpu_custom_call.1} parent=1 // loop_header
      %s12 = sphi 0, %s16
      %p13 = scmp.ge.s32.totalorder %s12, 10
      %s19 = sphi 0, %s31
      %s20 = sphi 0, %s27
      %s21 = sphi 0, %s19
      %s22 = sphi 0, %s20
      %s23 = sphi 0, %s21
      %s24 = sphi 0, %s22
      %s36 = sphi 0, %s38
      %s39 = sphi 0, %s36
      %s40 = sphi 0, %s39
      %s56 = sphi 0, %s40
      %s62 = sphi 0, %s64
      %s65 = sphi 0, %s62
      %s66 = sphi 0, %s65
      %s82 = sphi 0, %s66
      %s88 = sphi 0, %s90
      %s91 = sphi 0, %s88
      %s92 = sphi 0, %s91
      %s108 = sphi 0, %s92
      %s116 = sphi 0, %s118
      %s119 = sphi 0, %s116
      %s120 = sphi 0, %s119
      %s136 = sphi 0, %s120
    $region4: #{tpu_custom_call.1} parent=1 // loop_header_branch
      %15 = sbr.rel (%p13) target = $region8
    $region5: #{tpu_custom_call.1} parent=1 // loop_body
      %s17 = ssub.s32 %s12, 1
      %s18 = ssub.s32 %s12, 2
      %s25 = sadd.s32 1, %s20
      %p26 = scmp.ge.s32.totalorder %s25, 1
      %s27 = scalar_select %p26, 0, %s25
      %s28 = sadd.s32 1, %s19
      %s29 = scalar_select %p26, %s28, %s19
      %p30 = scmp.ge.s32.totalorder %s29, 8
      %s31 = scalar_select %p30, 0, %s29
      %s32 = ssub.s32 %s19, %s31
      %s33 = ssub.s32 %s20, %s27
      %s34 = sor.u32 %s32, %s33
      %p35 = scmp.eq.s32.totalorder %s34, 0
      %s37 = sadd.s32 %s36, 1
      %s38 = scalar_select %p35, %s36, %s37
      %p41 = pneg %p35
      %p42 = scmp.eq.s32.totalorder %s12, 7
      %p43 = por %p41, %p42
      %p44 = scmp.ne.s32.totalorder %s36, %s39
      %p45 = scmp.eq.s32.totalorder %s12, 0
      %p46 = por %p44, %p45
      %p47 = scmp.ne.s32.totalorder %s36, %s39
      %p48 = scmp.eq.s32.totalorder %s17, 7
      %p49 = por %p47, %p48
      %p50 = scmp.ne.s32.totalorder %s39, %s40
      %p51 = scmp.eq.s32.totalorder %s17, 0
      %p52 = por %p50, %p51
      %p53 = scmp.ne.s32.totalorder %s39, %s40
      %p54 = scmp.eq.s32.totalorder %s18, 7
      %p55 = por %p53, %p54
      %p57 = scmp.ne.s32.totalorder %s40, %s56
      %p58 = scmp.eq.s32.totalorder %s18, 0
      %p59 = por %p57, %p58
      %s60 = ssub.s32 %s20, %s27
      %p61 = scmp.eq.s32.totalorder %s60, 0
      %s63 = sadd.s32 %s62, 1
      %s64 = scalar_select %p61, %s62, %s63
      %p67 = pneg %p61
      %p68 = scmp.eq.s32.totalorder %s12, 7
      %p69 = por %p67, %p68
      %p70 = scmp.ne.s32.totalorder %s62, %s65
      %p71 = scmp.eq.s32.totalorder %s12, 0
      %p72 = por %p70, %p71
      %p73 = scmp.ne.s32.totalorder %s62, %s65
      %p74 = scmp.eq.s32.totalorder %s17, 7
      %p75 = por %p73, %p74
      %p76 = scmp.ne.s32.totalorder %s65, %s66
      %p77 = scmp.eq.s32.totalorder %s17, 0
      %p78 = por %p76, %p77
      %p79 = scmp.ne.s32.totalorder %s65, %s66
      %p80 = scmp.eq.s32.totalorder %s18, 7
      %p81 = por %p79, %p80
      %p83 = scmp.ne.s32.totalorder %s66, %s82
      %p84 = scmp.eq.s32.totalorder %s18, 0
      %p85 = por %p83, %p84
      %s86 = ssub.s32 %s20, %s27
      %p87 = scmp.eq.s32.totalorder %s86, 0
      %s89 = sadd.s32 %s88, 1
      %s90 = scalar_select %p87, %s88, %s89
      %p93 = pneg %p87
      %p94 = scmp.eq.s32.totalorder %s12, 7
      %p95 = por %p93, %p94
      %p96 = scmp.ne.s32.totalorder %s88, %s91
      %p97 = scmp.eq.s32.totalorder %s12, 0
      %p98 = por %p96, %p97
      %p99 = scmp.ne.s32.totalorder %s88, %s91
      %p100 = scmp.eq.s32.totalorder %s17, 7
      %p101 = por %p99, %p100
      %p102 = scmp.ne.s32.totalorder %s91, %s92
      %p103 = scmp.eq.s32.totalorder %s17, 0
      %p104 = por %p102, %p103
      %p105 = scmp.ne.s32.totalorder %s91, %s92
      %p106 = scmp.eq.s32.totalorder %s18, 7
      %p107 = por %p105, %p106
      %p109 = scmp.ne.s32.totalorder %s92, %s108
      %p110 = scmp.eq.s32.totalorder %s18, 0
      %p111 = por %p109, %p110
      %s112 = ssub.s32 %s19, %s31
      %s113 = ssub.s32 %s20, %s27
      %s114 = sor.u32 %s112, %s113
      %p115 = scmp.eq.s32.totalorder %s114, 0
      %s117 = sadd.s32 %s116, 1
      %s118 = scalar_select %p115, %s116, %s117
      %p121 = pneg %p115
      %p122 = scmp.eq.s32.totalorder %s12, 7
      %p123 = por %p121, %p122
      %p124 = scmp.ne.s32.totalorder %s116, %s119
      %p125 = scmp.eq.s32.totalorder %s12, 0
      %p126 = por %p124, %p125
      %p127 = scmp.ne.s32.totalorder %s116, %s119
      %p128 = scmp.eq.s32.totalorder %s17, 7
      %p129 = por %p127, %p128
      %p130 = scmp.ne.s32.totalorder %s119, %s120
      %p131 = scmp.eq.s32.totalorder %s17, 0
      %p132 = por %p130, %p131
      %p133 = scmp.ne.s32.totalorder %s119, %s120
      %p134 = scmp.eq.s32.totalorder %s18, 7
      %p135 = por %p133, %p134
      %p137 = scmp.ne.s32.totalorder %s120, %s136
      %p138 = scmp.eq.s32.totalorder %s18, 0
      %p139 = por %p137, %p138
      %p140 = scmp.le.s32.totalorder 1, %s12
      %p141 = scmp.lt.s32.totalorder %s12, 9
      %p142 = pnand %p140, %p141
      %p143 = pneg %p142
      // Predicated region
      $region9: #{tpu_custom_call.1} parent=5 // pred_check
        _
      $region10: #{tpu_custom_call.1} parent=5 // pred_check_branch
        %145 = sbr.rel (%p142) target = $region12
      $region11: #{tpu_custom_call.1} parent=5 // pred_region
        %s146 = ssub.s32 %s12, 1
        // Predicated region
        $region13: #{tpu_custom_call.1} parent=11 // pred_check
          %p147 = pneg %p78
        $region14: #{tpu_custom_call.1} parent=11 // pred_check_branch
          %149 = sbr.rel (%p147) target = $region16
        $region15: #{tpu_custom_call.1} parent=11 // pred_region
          %p150 = scmp.lt.s32.totalorder %s22, 0
          %s151 = scalar_select %p150, %s22, 0
          %s152 = smul.addr %s151, 4
          %s153 = scalar_lea.vmem %s1, %s152
        $region16: #{tpu_custom_call.1} parent=11 // pred_fallthru
          _
        // Predicated region
        $region17: #{tpu_custom_call.1} parent=11 // pred_check
          %p154 = pneg %p104
        $region18: #{tpu_custom_call.1} parent=11 // pred_check_branch
          %156 = sbr.rel (%p154) target = $region20
        $region19: #{tpu_custom_call.1} parent=11 // pred_region
          %p157 = scmp.lt.s32.totalorder %s22, 0
          %s158 = scalar_select %p157, %s22, 0
          %s159 = smul.addr %s158, 4
          %s160 = scalar_lea.vmem %s2, %s159
        $region20: #{tpu_custom_call.1} parent=11 // pred_fallthru
          _
      $region12: #{tpu_custom_call.1} parent=5 // pred_fallthru
        _
      %p161 = scmp.lt.s32.totalorder %s12, 8
      // Predicated region
      $region21: #{tpu_custom_call.1} parent=5 // pred_check
        %p162 = pneg %p161
      $region22: #{tpu_custom_call.1} parent=5 // pred_check_branch
        %164 = sbr.rel (%p162) target = $region24
      $region23: #{tpu_custom_call.1} parent=5 // pred_region
        // Predicated region
        $region25: #{tpu_custom_call.1} parent=23 // pred_check
          %p165 = pneg %p46
        $region26: #{tpu_custom_call.1} parent=23 // pred_check_branch
          %167 = sbr.rel (%p165) target = $region28
        $region27: #{tpu_custom_call.1} parent=23 // pred_region
          %p168 = scmp.lt.s32.totalorder %s19, 7
          %s169 = scalar_select %p168, %s19, 7
          %p170 = scmp.lt.s32.totalorder %s20, 0
          %s171 = scalar_select %p170, %s20, 0
          %s172 = sadd.s32 %s171, %s169
          %s173 = smul.addr %s172, 4
          %s174 = scalar_lea.vmem %s0, %s173
        $region28: #{tpu_custom_call.1} parent=23 // pred_fallthru
          _
      $region24: #{tpu_custom_call.1} parent=5 // pred_fallthru
        _
      %p175 = scmp.le.s32.totalorder 1, %s12
      %p176 = scmp.lt.s32.totalorder %s12, 9
      %p177 = pnand %p175, %p176
      %p178 = pneg %p177
      // Predicated region
      $region29: #{tpu_custom_call.1} parent=5 // pred_check
        _
      $region30: #{tpu_custom_call.1} parent=5 // pred_check_branch
        %180 = sbr.rel (%p177) target = $region32
      $region31: #{tpu_custom_call.1} parent=5 // pred_region
        %s181 = ssub.s32 %s12, 1
        %p182 = scmp.lt.s32.totalorder %s21, 7
        %s183 = scalar_select %p182, %s21, 7
        %p184 = scmp.lt.s32.totalorder %s22, 0
        %s185 = scalar_select %p184, %s22, 0
        %s186 = sadd.s32 %s185, %s183
        %s187 = smul.addr %s186, 4
        %s188 = scalar_lea.vmem %s0, %s187
        %p189 = pneg %p52
        %p190 = pneg %p49
        %p191 = scmp.lt.s32.totalorder %s22, 0
        %s192 = scalar_select %p191, %s22, 0
        %s193 = smul.addr %s192, 4
        %s194 = scalar_lea.vmem %s1, %s193
        %p195 = pneg %p78
        %p196 = pneg %p75
        %p197 = scmp.lt.s32.totalorder %s22, 0
        %s198 = scalar_select %p197, %s22, 0
        %s199 = smul.addr %s198, 4
        %s200 = scalar_lea.vmem %s2, %s199
        %p201 = pneg %p104
        %p202 = pneg %p101
        %p203 = pneg %p132
        %p204 = pneg %p129
        %s205 = sand.u32 %s119, 1
        %s206 = scalar_lea.sflag [#allocation3], %s205
        %s207 = sand.u32 %s119, 1
        %s208 = smul.addr %s207, 4
        %s209 = scalar_lea.vmem [#allocation2], %s208
        %p210 = scmp.lt.s32.totalorder %s21, 7
        %s211 = scalar_select %p210, %s21, 7
        %p212 = scmp.lt.s32.totalorder %s22, 0
        %s213 = scalar_select %p212, %s22, 0
        %s214 = sadd.s32 %s213, %s211
        %s215 = smul.addr %s214, 4
        %s216 = scalar_lea.vmem %s0, %s215
        %p217 = scmp.lt.s32.totalorder %s22, 0
        %s218 = scalar_select %p217, %s22, 0
        %s219 = smul.addr %s218, 4
        %s220 = scalar_lea.vmem %s1, %s219
        %p221 = scmp.lt.s32.totalorder %s22, 0
        %s222 = scalar_select %p221, %s22, 0
        %s223 = smul.addr %s222, 4
        %s224 = scalar_lea.vmem %s2, %s223
        %v225 = vld [vmem:[%s216] sm:$0xf]
        %v226 = vld [vmem:[%s224] sm:$0xf]
        %v227 = vld [vmem:[%s220] sm:$0xf]
        %s228 = scalar_lea.vmem %s220, 4
        %v229 = vld [vmem:[%s228] sm:$0xf]
        %s230 = scalar_lea.vmem %s220, 8
        %v231 = vld [vmem:[%s230] sm:$0xf]
        %s232 = scalar_lea.vmem %s220, 12
        %v233 = vld [vmem:[%s232] sm:$0xf]
        %s234 = scalar_lea.vmem %s220, 16
        %v235 = vld [vmem:[%s234] sm:$0xf]
        %s236 = scalar_lea.vmem %s220, 20
        %v237 = vld [vmem:[%s236] sm:$0xf]
        %s238 = scalar_lea.vmem %s220, 24
        %v239 = vld [vmem:[%s238] sm:$0xf]
        %s240 = scalar_lea.vmem %s220, 28
        %v241 = vld [vmem:[%s240] sm:$0xf]
        %s242 = scalar_lea.vmem %s220, 32
        %v243 = vld [vmem:[%s242] sm:$0xf]
        %245 = vset.pattern.permute.xlu0 0
        %246 = vperm.xlu0 %245, %v227
        %v247 = vpop.permute.xlu0 %246
        %v249 = vmul.f32 %v225, %v247
        %v250 = vadd.f32 %v249, 0.0
        %252 = vset.pattern.permute.xlu0 0
        %253 = vperm.xlu0 %252, %v229
        %v254 = vpop.permute.xlu0 %253
        %v256 = vmul.f32 %v225, %v254
        %258 = vrot.lane.b32.xlu0 %v256, 127
        %v259 = vpop.permute.xlu0 %258
        %v261 = vadd.f32 %v250, %v259
        %263 = vset.pattern.permute.xlu0 0
        %264 = vperm.xlu0 %263, %v231
        %v265 = vpop.permute.xlu0 %264
        %v267 = vmul.f32 %v225, %v265
        %269 = vrot.lane.b32.xlu0 %v267, 126
        %v270 = vpop.permute.xlu0 %269
        %v272 = vadd.f32 %v261, %v270
        %274 = vset.pattern.permute.xlu0 0
        %275 = vperm.xlu0 %274, %v233
        %v276 = vpop.permute.xlu0 %275
        %v278 = vmul.f32 %v225, %v276
        %280 = vrot.lane.b32.xlu0 %v278, 110
        %v281 = vpop.permute.xlu0 %280
        %v283 = vadd.f32 %v272, %v281
        %285 = vset.pattern.permute.xlu0 0
        %286 = vperm.xlu0 %285, %v235
        %v287 = vpop.permute.xlu0 %286
        %v289 = vmul.f32 %v225, %v287
        %291 = vrot.lane.b32.xlu0 %v289, 109
        %v292 = vpop.permute.xlu0 %291
        %v294 = vadd.f32 %v283, %v292
        %296 = vset.pattern.permute.xlu0 0
        %297 = vperm.xlu0 %296, %v237
        %v298 = vpop.permute.xlu0 %297
        %v300 = vmul.f32 %v225, %v298
        %302 = vrot.lane.b32.xlu0 %v300, 108
        %v303 = vpop.permute.xlu0 %302
        %v305 = vadd.f32 %v294, %v303
        %307 = vset.pattern.permute.xlu0 0
        %308 = vperm.xlu0 %307, %v239
        %v309 = vpop.permute.xlu0 %308
        %v311 = vmul.f32 %v225, %v309
        %313 = vrot.lane.b32.xlu0 %v311, 92
        %v314 = vpop.permute.xlu0 %313
        %v316 = vadd.f32 %v305, %v314
        %318 = vset.pattern.permute.xlu0 0
        %319 = vperm.xlu0 %318, %v241
        %v320 = vpop.permute.xlu0 %319
        %v322 = vmul.f32 %v225, %v320
        %324 = vrot.lane.b32.xlu0 %v322, 91
        %v325 = vpop.permute.xlu0 %324
        %v327 = vadd.f32 %v316, %v325
        %329 = vset.pattern.permute.xlu0 0
        %330 = vperm.xlu0 %329, %v243
        %v331 = vpop.permute.xlu0 %330
        %v333 = vmul.f32 %v225, %v331
        %335 = vrot.lane.b32.xlu0 %v333, 90
        %v336 = vpop.permute.xlu0 %335
        %v338 = vadd.f32 %v327, %v336
        %340 = vset.pattern.permute.xlu0 0
        %341 = vperm.xlu0 %340, %v226
        %v342 = vpop.permute.xlu0 %341
        %v344 = vadd.f32 %v338, %v342
        %vm345 = vcmask 584704
        %346 = vst.msk [vmem:[%s209] sm:$0xf] %vm345, %v344
        %s347 = sand.u32 %s119, 1
        %s348 = scalar_lea.sflag [#allocation3], %s347
        %s349 = sand.u32 %s119, 1
        %s350 = smul.addr %s349, 4
        %s351 = scalar_lea.vmem [#allocation2], %s350
        // Predicated region
        $region33: #{tpu_custom_call.1} parent=31 // pred_check
          %p352 = pneg %p129
        $region34: #{tpu_custom_call.1} parent=31 // pred_check_branch
          %354 = sbr.rel (%p352) target = $region36
        $region35: #{tpu_custom_call.1} parent=31 // pred_region
          %356 = vsyncadd %s348, 0
          %s357 = sadd.s32 %s22, %s21
          %s358 = smul.addr %s357, 4
          %s359 = scalar_lea.hbm %s3, %s358
          %s361 = sshll.u32 %s351, 4
          %s362 = int_to_ptr.vmem [resolvable:$true] %s361
          %s363 = sshll.u32 %s359, 4
          %s364 = int_to_ptr.hbm [resolvable:$true] %s363
          %366 = dma.vmem_to_hbm [thread:$0]  %s362, 64, %s364, %s348
        $region36: #{tpu_custom_call.1} parent=31 // pred_fallthru
          _
      $region32: #{tpu_custom_call.1} parent=5 // pred_fallthru
        _
      %p367 = scmp.le.s32.totalorder 2, %s12
      // Predicated region
      $region37: #{tpu_custom_call.1} parent=5 // pred_check
        %p368 = pneg %p367
      $region38: #{tpu_custom_call.1} parent=5 // pred_check_branch
        %370 = sbr.rel (%p368) target = $region40
      $region39: #{tpu_custom_call.1} parent=5 // pred_region
        %s371 = ssub.s32 %s12, 2
        // Predicated region
        $region41: #{tpu_custom_call.1} parent=39 // pred_check
          %p372 = pneg %p135
        $region42: #{tpu_custom_call.1} parent=39 // pred_check_branch
          %374 = sbr.rel (%p372) target = $region44
        $region43: #{tpu_custom_call.1} parent=39 // pred_region
          %s375 = sand.u32 %s120, 1
          %s376 = scalar_lea.sflag [#allocation3], %s375
          %s377 = sand.u32 %s120, 1
          %s378 = smul.addr %s377, 4
          %s379 = scalar_lea.vmem [#allocation2], %s378
          %381 = dma.done %s376, 64
        $region44: #{tpu_custom_call.1} parent=39 // pred_fallthru
          _
      $region40: #{tpu_custom_call.1} parent=5 // pred_fallthru
        _
    $region6: #{tpu_custom_call.1} parent=1 // loop_footer
      %s16 = sadd.s32 1, %s12
    $region7: #{tpu_custom_call.1} parent=1 // loop_footer_branch
      %11 = sbr.rel target = $region3
    $region8: #{tpu_custom_call.1} parent=1 // loop_exit
      _
    %382 = vsyncpa [#allocation3], 1
    %s383 = scalar_lea.sflag [#allocation3], 1
    %384 = vsyncpa %s383, 1

</llo_original>
